<compile_context>
chip_gen: v5e
topology: v5e:2x2
jax: 0.10.0
libtpu: 0.0.40
codegen_flags: <defaults>
</compile_context>

<pallas_src>
import jax
import jax.numpy as jnp
from jax.experimental import pallas as pl
from jax.experimental.pallas import tpu as pltpu

EPS = 1e-5          # nn.LayerNorm default
TILE_M = 64         # rows per grid step (multiple of 8; full C kept as last dim)


# ----------------------------- Pallas kernels ------------------------------

def ln_kernel(x_ref, g_ref, b_ref, y_ref):
    """LayerNorm over the channel dim for one (TILE_M, C) tile."""
    x = x_ref[...]
    mu = jnp.mean(x, axis=-1, keepdims=True)
    var = jnp.mean(jnp.square(x - mu), axis=-1, keepdims=True)
    y_ref[...] = (x - mu) * jax.lax.rsqrt(var + EPS) * g_ref[...] + b_ref[...]


def spectral_kernel(x_ref, w1_ref, b1_ref, w2a_ref, b2r_ref,
                    w2i_ref, w2rz_ref, b2i_ref, yr_ref, yi_ref):
    """Fused block-diagonal complex 2-layer MLP in Fourier space.

    x_ref : (TILE_M, 2C) bf16, columns = [real | imag]
    w1    : (2C, 2C) bf16 = [[W1r, W1i], [-W1i, W1r]]
    w2a   : (2C, C)  bf16 = [[W2r], [-W2i]]
    w2rz  : (2C, C)  bf16 = [[0], [W2r]]   (gives o1_imag @ W2r without slicing)
    """
    f32, bf16 = jnp.float32, jnp.bfloat16
    x = x_ref[...]
    o1 = jnp.maximum(
        jnp.dot(x, w1_ref[...], preferred_element_type=f32) + b1_ref[...], 0.0)
    o1b = o1.astype(bf16)
    o2r = jnp.dot(o1b, w2a_ref[...], preferred_element_type=f32) + b2r_ref[...]
    # NOTE: matches the PyTorch code exactly — the imaginary update reuses the
    # *already updated* real part (o2r) and the layer-1 imaginary part.
    o2i = (jnp.dot(o2r.astype(bf16), w2i_ref[...], preferred_element_type=f32)
           + jnp.dot(o1b, w2rz_ref[...], preferred_element_type=f32)
           + b2i_ref[...])
    yr_ref[...] = o2r
    yi_ref[...] = o2i


def residual_mlp_kernel(x_ref, y_ref, f_ref, wct_ref, bc_ref, g_ref, b_ref,
                        w1_ref, b1_ref, w2_ref, b2_ref, o_ref):
    """bias = y@Wc^T+bc (fused 1x1-conv path); x1 = x + f + bias;
    out = x1 + fc2(GELU(fc1(LN(x1))))."""
    f32, bf16 = jnp.float32, jnp.bfloat16
    dot = lambda a, b: jnp.dot(a.astype(bf16), b, preferred_element_type=f32)
    bias = dot(y_ref[...], wct_ref[...]) + bc_ref[...]
    x1 = x_ref[...] + f_ref[...] + bias
    mu = jnp.mean(x1, axis=-1, keepdims=True)
    var = jnp.mean(jnp.square(x1 - mu), axis=-1, keepdims=True)
    yn = (x1 - mu) * jax.lax.rsqrt(var + EPS) * g_ref[...] + b_ref[...]
    # exact-erf GELU to match nn.GELU() semantics (tanh form would be cheaper).
    h = jax.nn.gelu(dot(yn, w1_ref[...]) + b1_ref[...], approximate=False)
    m = dot(h, w2_ref[...]) + b2_ref[...]
    o_ref[...] = x1 + m


# ----------------------------- pallas_call glue -----------------------------

def _tiled_call(kernel, acts, consts, out_widths, *, tile=TILE_M):
    """Run `kernel` over a 1-D grid of row tiles.

    acts   : list of (M, w) arrays streamed tile-by-tile.
    consts : list of small weight/bias arrays kept VMEM-resident
             (constant index_map -> loaded once, reused every grid step).
    """
    M = acts[0].shape[0]
    Mp = pl.cdiv(M, tile) * tile
    if Mp != M:                                   # pad rows to a tile multiple
        acts = [jnp.pad(a, ((0, Mp - M), (0, 0))) for a in acts]
    grid = (Mp // tile,)

    in_specs = [pl.BlockSpec((tile, a.shape[1]), lambda i: (i, 0)) for a in acts]
    in_specs += [pl.BlockSpec(tuple(c.shape), lambda i, n=c.ndim: (0,) * n)
                 for c in consts]

    multi = isinstance(out_widths, (tuple, list))
    widths = list(out_widths) if multi else [out_widths]
    out_specs = [pl.BlockSpec((tile, wd), lambda i: (i, 0)) for wd in widths]
    out_shape = [jax.ShapeDtypeStruct((Mp, wd), jnp.float32) for wd in widths]

    outs = pl.pallas_call(
        kernel,
        grid=grid,
        in_specs=in_specs,
        out_specs=out_specs if multi else out_specs[0],
        out_shape=out_shape if multi else out_shape[0],
        compiler_params=pltpu.CompilerParams(
            dimension_semantics=("parallel",),        # tiles independent (megacore)
            vmem_limit_bytes=32 * 1024 * 1024),
    )(*acts, *consts)

    if not multi:
        outs = (outs,)
    if Mp != M:
        outs = tuple(o[:M] for o in outs)
    else:
        outs = tuple(outs)
    return outs if multi else outs[0]


def fourier_net_block(x, p, h, w, *, tile=TILE_M):
    """Forward pass of FourierNetBlock.  x: (B, N, C) float32, N = h*w."""
    B, N, C = x.shape
    x2d = x.reshape(B * N, C)

    # --- LayerNorm1 (Pallas) ---
    y2d = _tiled_call(ln_kernel, [x2d], [p["ln1_g"], p["ln1_b"]], C, tile=tile)

    # --- FFT glue (no Pallas FFT primitive) ---
    xf = jnp.fft.rfft2(y2d.reshape(B, h, w, C), axes=(1, 2), norm="ortho")
    wf = xf.shape[2]
    Msp = B * h * wf
    xcat = jnp.concatenate(
        [jnp.real(xf).reshape(Msp, C), jnp.imag(xf).reshape(Msp, C)],
        axis=-1).astype(jnp.bfloat16)                 # [real | imag], bf16 MXU feed

    # --- spectral block-diagonal complex MLP (Pallas) ---
    yr, yi = _tiled_call(
        spectral_kernel, [xcat],
        [p["W1f"], p["B1f"], p["W2a"], p["b2r"], p["W2i_bf"], p["W2rz"], p["b2i"]],
        [C, C], tile=tile)
    # softshrink with lambd == 0.0 is skipped (falsy) in the PyTorch code.
    yc = (yr + 1j * yi).reshape(B, h, wf, C)
    f2d = jnp.fft.irfft2(yc, s=(h, w), axes=(1, 2), norm="ortho"
                         ).reshape(B * N, C).astype(jnp.float32)

    # --- residual + bias path + LayerNorm2 + MLP + residual (Pallas) ---
    out = _tiled_call(
        residual_mlp_kernel, [x2d, y2d, f2d],
        [p["wc_t_bf"], p["bc"], p["ln2_g"], p["ln2_b"],
         p["fc1_w_bf"], p["fc1_b"], p["fc2_w_bf"], p["fc2_b"]],
        C, tile=tile)
    return out.reshape(B, N, C)


def _block_diag(wb):  # wb: (nb, bs, bs) -> (nb*bs, nb*bs)
    nb, bs, _ = wb.shape
    out = jnp.zeros((nb * bs, nb * bs), wb.dtype)
    for b in range(nb):
        out = out.at[b * bs:(b + 1) * bs, b * bs:(b + 1) * bs].set(wb[b])
    return out


# ----------------------------- pure-JAX reference ---------------------------

def reference(x, p, h, w, num_blocks):
    B, N, C = x.shape
    bs = C // num_blocks
    hp = "highest"

    def ln(z, g, b):
        mu = z.mean(-1, keepdims=True)
        var = jnp.square(z - mu).mean(-1, keepdims=True)
        return (z - mu) / jnp.sqrt(var + EPS) * g + b

    y = ln(x, p["ln1_g"][0], p["ln1_b"][0])
    bias = jnp.einsum("bnc,cd->bnd", y, p["wc_t"], precision=hp) + p["bc"][0]

    xf = jnp.fft.rfft2(y.reshape(B, h, w, C), axes=(1, 2), norm="ortho")
    xf = xf.reshape(B, h, xf.shape[2], num_blocks, bs)
    mult = lambda a, wt: jnp.einsum("...bd,bdk->...bk", a, wt, precision=hp)
    xr = jax.nn.relu(mult(xf.real, p["w1"][0]) - mult(xf.imag, p["w1"][1]) + p["b1"][0])
    xi = jax.nn.relu(mult(xf.real, p["w1"][1]) + mult(xf.imag, p["w1"][0]) + p["b1"][1])
    xr2 = mult(xr, p["w2"][0]) - mult(xi, p["w2"][1]) + p["b2"][0]
    xi2 = mult(xr2, p["w2"][1]) + mult(xi, p["w2"][0]) + p["b2"][1]
    xc = (xr2 + 1j * xi2).reshape(B, h, -1, C)
    f = jnp.fft.irfft2(xc, s=(h, w), axes=(1, 2), norm="ortho").reshape(B, N, C)

    x1 = x + f + bias
    y2 = ln(x1, p["ln2_g"][0], p["ln2_b"][0])
    hid = jax.nn.gelu(
        jnp.einsum("bnc,ch->bnh", y2, p["fc1_w"], precision=hp) + p["fc1_b"][0],
        approximate=False)
    m = jnp.einsum("bnh,hc->bnc", hid, p["fc2_w"], precision=hp) + p["fc2_b"][0]
    return x1 + m


# ------------------------------------ main -----------------------------------

if __name__ == "__main__":
    B, h, w, C = 2, 8, 8, 16         # dim=16, h=w=8 -> N=64 tokens
    N = h * w
    num_blocks = 2
    bs = C // num_blocks
    H = int(C * 4.0)                 # mlp hidden
    scale = 0.02

    key = jax.random.PRNGKey(0)
    ks = jax.random.split(key, 12)
    rnd = lambda k, s: scale * jax.random.normal(k, s, jnp.float32)

    p = {
        # AFNO spectral weights (block form, as in PyTorch)
        "w1": rnd(ks[0], (2, num_blocks, bs, bs)),
        "b1": rnd(ks[1], (2, num_blocks, bs)),
        "w2": rnd(ks[2], (2, num_blocks, bs, bs)),
        "b2": rnd(ks[3], (2, num_blocks, bs)),
        # 1x1 Conv1d bias path: wc_t is (C_in, C_out) so y @ wc_t == conv1d
        "wc_t": rnd(ks[4], (C, C)),
        "bc": rnd(ks[5], (1, C)),
        # LayerNorms (PyTorch default init)
        "ln1_g": jnp.ones((1, C), jnp.float32),
        "ln1_b": jnp.zeros((1, C), jnp.float32),
        "ln2_g": jnp.ones((1, C), jnp.float32),
        "ln2_b": jnp.zeros((1, C), jnp.float32),
        # MLP
        "fc1_w": rnd(ks[6], (C, H)),
        "fc1_b": rnd(ks[7], (1, H)),
        "fc2_w": rnd(ks[8], (H, C)),
        "fc2_b": rnd(ks[9], (1, C)),
    }

    # ---- derived kernel params: fused spectral weights, bf16 MXU operands ----
    bf16 = jnp.bfloat16
    W1r, W1i = _block_diag(p["w1"][0]), _block_diag(p["w1"][1])
    W2r, W2i = _block_diag(p["w2"][0]), _block_diag(p["w2"][1])
    b1r, b1i = p["b1"][0].reshape(1, C), p["b1"][1].reshape(1, C)
    p["b2r"], p["b2i"] = p["b2"][0].reshape(1, C), p["b2"][1].reshape(1, C)

    # layer 1: [xr|xi] @ [[W1r, W1i], [-W1i, W1r]]  -> [o1r | o1i]
    p["W1f"] = jnp.concatenate(
        [jnp.concatenate([W1r, W1i], axis=1),
         jnp.concatenate([-W1i, W1r], axis=1)], axis=0).astype(bf16)
    p["B1f"] = jnp.concatenate([b1r, b1i], axis=-1)            # f32 bias
    # layer 2 real: [o1r|o1i] @ [[W2r], [-W2i]]
    p["W2a"] = jnp.concatenate([W2r, -W2i], axis=0).astype(bf16)
    # layer 2 imag: o2r @ W2i + [o1r|o1i] @ [[0],[W2r]]
    p["W2i_bf"] = W2i.astype(bf16)
    p["W2rz"] = jnp.concatenate([jnp.zeros_like(W2r), W2r], axis=0).astype(bf16)
    # bf16 copies of the dense matmul weights (biases stay f32)
    p["wc_t_bf"] = p["wc_t"].astype(bf16)
    p["fc1_w_bf"] = p["fc1_w"].astype(bf16)
    p["fc2_w_bf"] = p["fc2_w"].astype(bf16)

    x = jax.random.normal(ks[10], (B, N, C), jnp.float32)

    out = fourier_net_block(x, p, h, w)
    out = jax.block_until_ready(out)

    ref = reference(x, p, h, w, num_blocks)
    assert out.shape == (B, N, C)
    # Tolerance accounts for bf16 MXU operands (f32 accumulation) in the kernels
    # vs. the all-f32 highest-precision reference.
    assert jnp.allclose(out, ref, atol=1e-2, rtol=1e-2), (
        f"max abs diff {float(jnp.max(jnp.abs(out - ref)))}")

    print("KERNEL_OK")
</pallas_src>

<mosaic_0001>
module attributes {stable_mosaic.version = 11 : i64} {
  func.func @ln_kernel(%arg0: i32, %arg1: memref<64x16xf32, #tpu.memory_space<vmem>>, %arg2: memref<1x16xf32, #tpu.memory_space<vmem>>, %arg3: memref<1x16xf32, #tpu.memory_space<vmem>>, %arg4: memref<64x16xf32, #tpu.memory_space<vmem>>) attributes {dimension_semantics = [#tpu.dimension_semantics<parallel>], iteration_bounds = array<i64: 2>, scalar_prefetch = 0 : i64, scratch_operands = 0 : i64, tpu.core_type = #tpu.core_type<tc>, window_params = [{transform_indices = @transform_0, window_bounds = array<i64: 64, 16>}, {pipeline_mode = #tpu.pipeline_mode<synchronous>, transform_indices = @transform_1, window_bounds = array<i64: 1, 16>}, {pipeline_mode = #tpu.pipeline_mode<synchronous>, transform_indices = @transform_2, window_bounds = array<i64: 1, 16>}, {transform_indices = @transform_3, window_bounds = array<i64: 64, 16>}]} {
    %c0 = arith.constant 0 : index
    %c0_0 = arith.constant 0 : index
    %0 = vector.load %arg1[%c0, %c0_0] : memref<64x16xf32, #tpu.memory_space<vmem>>, vector<64x16xf32>
    %cst = arith.constant dense<0.000000e+00> : vector<64xf32>
    %1 = vector.multi_reduction <add>, %0, %cst [1] : vector<64x16xf32> to vector<64xf32>
    %2 = vector.shape_cast %1 : vector<64xf32> to vector<64x1xf32>
    %cst_1 = arith.constant 1.600000e+01 : f32
    %3 = vector.broadcast %cst_1 : f32 to vector<64x1xf32>
    %4 = arith.divf %2, %3 : vector<64x1xf32>
    %5 = vector.broadcast %4 : vector<64x1xf32> to vector<64x16xf32>
    %6 = arith.subf %0, %5 : vector<64x16xf32>
    %7 = arith.mulf %6, %6 : vector<64x16xf32>
    %cst_2 = arith.constant dense<0.000000e+00> : vector<64xf32>
    %8 = vector.multi_reduction <add>, %7, %cst_2 [1] : vector<64x16xf32> to vector<64xf32>
    %9 = vector.shape_cast %8 : vector<64xf32> to vector<64x1xf32>
    %cst_3 = arith.constant 1.600000e+01 : f32
    %10 = vector.broadcast %cst_3 : f32 to vector<64x1xf32>
    %11 = arith.divf %9, %10 : vector<64x1xf32>
    %12 = vector.broadcast %4 : vector<64x1xf32> to vector<64x16xf32>
    %13 = arith.subf %0, %12 : vector<64x16xf32>
    %cst_4 = arith.constant 9.99999974E-6 : f32
    %14 = vector.broadcast %cst_4 : f32 to vector<64x1xf32>
    %15 = arith.addf %11, %14 : vector<64x1xf32>
    %16 = math.rsqrt %15 : vector<64x1xf32>
    %17 = vector.broadcast %16 : vector<64x1xf32> to vector<64x16xf32>
    %18 = arith.mulf %13, %17 : vector<64x16xf32>
    %c0_5 = arith.constant 0 : index
    %c0_6 = arith.constant 0 : index
    %19 = vector.load %arg2[%c0_5, %c0_6] : memref<1x16xf32, #tpu.memory_space<vmem>>, vector<1x16xf32>
    %20 = vector.broadcast %19 : vector<1x16xf32> to vector<64x16xf32>
    %21 = arith.mulf %18, %20 : vector<64x16xf32>
    %c0_7 = arith.constant 0 : index
    %c0_8 = arith.constant 0 : index
    %22 = vector.load %arg3[%c0_7, %c0_8] : memref<1x16xf32, #tpu.memory_space<vmem>>, vector<1x16xf32>
    %23 = vector.broadcast %22 : vector<1x16xf32> to vector<64x16xf32>
    %24 = arith.addf %21, %23 : vector<64x16xf32>
    %c0_9 = arith.constant 0 : index
    %c0_10 = arith.constant 0 : index
    %25 = vector.load %arg4[%c0_9, %c0_10] : memref<64x16xf32, #tpu.memory_space<vmem>>, vector<64x16xf32>
    tpu.vector_store %arg4[%c0_9, %c0_10], %24 {strides = array<i32>} : memref<64x16xf32, #tpu.memory_space<vmem>>, vector<64x16xf32>,
    return
  }
  func.func @transform_0(%arg0: i32) -> (i32, i32) {
    %c0_i32 = arith.constant 0 : i32
    %c0_i32_0 = arith.constant 0 : i32
    return %arg0, %c0_i32 : i32, i32
  }
  func.func @transform_1(%arg0: i32) -> (i32, i32) {
    %c0_i32 = arith.constant 0 : i32
    %c0_i32_0 = arith.constant 0 : i32
    %c0_i32_1 = arith.constant 0 : i32
    return %c0_i32, %c0_i32_0 : i32, i32
  }
  func.func @transform_2(%arg0: i32) -> (i32, i32) {
    %c0_i32 = arith.constant 0 : i32
    %c0_i32_0 = arith.constant 0 : i32
    %c0_i32_1 = arith.constant 0 : i32
    return %c0_i32, %c0_i32_0 : i32, i32
  }
  func.func @transform_3(%arg0: i32) -> (i32, i32) {
    %c0_i32 = arith.constant 0 : i32
    %c0_i32_0 = arith.constant 0 : i32
    return %arg0, %c0_i32 : i32, i32
  }
}

</mosaic_0001>

<llo_original>
// kernel: tpu_custom_call.1
$region0: #{tpu_custom_call.1}
  #allocation0 [shape = 'u32[]', space=smem, size = 0x4, offset = 0x4, fixed_abs, tag = 'smem constant byte address 0x4 - core index']
  #allocation1 [shape = 'u32[72,128]{1,0:T(1,128)}', space=vmem, size = 0x9000, scoped, tag = 'internal scratch']
  %s0 = inlined_call_operand.vmem [shape: f32[128,16], index: 0, kind: input, shape index: {}]
  %s1 = inlined_call_operand.vmem [shape: f32[1,16], index: 1, kind: input, shape index: {}]
  %s2 = inlined_call_operand.vmem [shape: f32[1,16], index: 2, kind: input, shape index: {}]
  %s3 = inlined_call_operand.vmem [shape: f32[128,16], index: 3, kind: output, shape index: {}]
  %s4 = sld [smem:[#allocation0]]
  $region45: #{tpu_custom_call.1} parent=0
    _
  %s6 = ssub.s32 1, %s4
  %s7 = scalar_select 0, %s6, %s4
  loop: start=0, step=1, limit=4
  $region2: #{tpu_custom_call.1} parent=0 // loop_pre_header
    _
  $region3: #{tpu_custom_call.1} parent=0 // loop_header
    %s9 = sphi 0, %s13
    %p10 = scmp.ge.s32.totalorder %s9, 4
    %s19 = sphi 0, %s21
    %s22 = sphi 0, %s19
    %s23 = sphi 0, %s22
    %s39 = sphi 0, %s23
    %s43 = sphi 0, %s43
    %s45 = sphi 0, %s43
    %s46 = sphi 0, %s45
    %s60 = sphi 0, %s46
    %s64 = sphi 0, %s64
    %s66 = sphi 0, %s64
    %s67 = sphi 0, %s66
    %s81 = sphi 0, %s67
    %s87 = sphi 0, %s89
    %s90 = sphi 0, %s87
    %s91 = sphi 0, %s90
    %s107 = sphi 0, %s91
  $region4: #{tpu_custom_call.1} parent=0 // loop_header_branch
    %12 = sbr.rel (%p10) target = $region8
  $region5: #{tpu_custom_call.1} parent=0 // loop_body
    %s14 = ssub.s32 %s9, 1
    %s15 = ssub.s32 %s9, 2
    %s16 = sadd.s32 %s9, 1
    %s17 = ssub.s32 %s9, %s16
    %p18 = scmp.eq.s32.totalorder %s17, 0
    %s20 = sadd.s32 %s19, 1
    %s21 = scalar_select %p18, %s19, %s20
    %p24 = pneg %p18
    %p25 = scmp.eq.s32.totalorder %s9, 1
    %p26 = por %p24, %p25
    %p27 = scmp.ne.s32.totalorder %s19, %s22
    %p28 = scmp.eq.s32.totalorder %s9, 0
    %p29 = por %p27, %p28
    %p30 = scmp.ne.s32.totalorder %s19, %s22
    %p31 = scmp.eq.s32.totalorder %s14, 1
    %p32 = por %p30, %p31
    %p33 = scmp.ne.s32.totalorder %s22, %s23
    %p34 = scmp.eq.s32.totalorder %s14, 0
    %p35 = por %p33, %p34
    %p36 = scmp.ne.s32.totalorder %s22, %s23
    %p37 = scmp.eq.s32.totalorder %s15, 1
    %p38 = por %p36, %p37
    %p40 = scmp.ne.s32.totalorder %s23, %s39
    %p41 = scmp.eq.s32.totalorder %s15, 0
    %p42 = por %p40, %p41
    %s44 = sadd.s32 %s43, 1
    %p47 = scmp.eq.s32.totalorder %s9, 1
    %p48 = scmp.ne.s32.totalorder %s43, %s45
    %p49 = scmp.eq.s32.totalorder %s9, 0
    %p50 = por %p48, %p49
    %p51 = scmp.ne.s32.totalorder %s43, %s45
    %p52 = scmp.eq.s32.totalorder %s14, 1
    %p53 = por %p51, %p52
    %p54 = scmp.ne.s32.totalorder %s45, %s46
    %p55 = scmp.eq.s32.totalorder %s14, 0
    %p56 = por %p54, %p55
    %p57 = scmp.ne.s32.totalorder %s45, %s46
    %p58 = scmp.eq.s32.totalorder %s15, 1
    %p59 = por %p57, %p58
    %p61 = scmp.ne.s32.totalorder %s46, %s60
    %p62 = scmp.eq.s32.totalorder %s15, 0
    %p63 = por %p61, %p62
    %s65 = sadd.s32 %s64, 1
    %p68 = scmp.eq.s32.totalorder %s9, 1
    %p69 = scmp.ne.s32.totalorder %s64, %s66
    %p70 = scmp.eq.s32.totalorder %s9, 0
    %p71 = por %p69, %p70
    %p72 = scmp.ne.s32.totalorder %s64, %s66
    %p73 = scmp.eq.s32.totalorder %s14, 1
    %p74 = por %p72, %p73
    %p75 = scmp.ne.s32.totalorder %s66, %s67
    %p76 = scmp.eq.s32.totalorder %s14, 0
    %p77 = por %p75, %p76
    %p78 = scmp.ne.s32.totalorder %s66, %s67
    %p79 = scmp.eq.s32.totalorder %s15, 1
    %p80 = por %p78, %p79
    %p82 = scmp.ne.s32.totalorder %s67, %s81
    %p83 = scmp.eq.s32.totalorder %s15, 0
    %p84 = por %p82, %p83
    %s85 = ssub.s32 %s9, %s16
    %p86 = scmp.eq.s32.totalorder %s85, 0
    %s88 = sadd.s32 %s87, 1
    %s89 = scalar_select %p86, %s87, %s88
    %p92 = pneg %p86
    %p93 = scmp.eq.s32.totalorder %s9, 1
    %p94 = por %p92, %p93
    %p95 = scmp.ne.s32.totalorder %s87, %s90
    %p96 = scmp.eq.s32.totalorder %s9, 0
    %p97 = por %p95, %p96
    %p98 = scmp.ne.s32.totalorder %s87, %s90
    %p99 = scmp.eq.s32.totalorder %s14, 1
    %p100 = por %p98, %p99
    %p101 = scmp.ne.s32.totalorder %s90, %s91
    %p102 = scmp.eq.s32.totalorder %s14, 0
    %p103 = por %p101, %p102
    %p104 = scmp.ne.s32.totalorder %s90, %s91
    %p105 = scmp.eq.s32.totalorder %s15, 1
    %p106 = por %p104, %p105
    %p108 = scmp.ne.s32.totalorder %s91, %s107
    %p109 = scmp.eq.s32.totalorder %s15, 0
    %p110 = por %p108, %p109
    %p111 = scmp.le.s32.totalorder 1, %s9
    %p112 = scmp.lt.s32.totalorder %s9, 3
    %p113 = pnand %p111, %p112
    %p114 = pneg %p113
    // Predicated region
    $region9: #{tpu_custom_call.1} parent=5 // pred_check
      _
    $region10: #{tpu_custom_call.1} parent=5 // pred_check_branch
      %116 = sbr.rel (%p113) target = $region12
    $region11: #{tpu_custom_call.1} parent=5 // pred_region
      %s117 = ssub.s32 %s9, 1
      // Predicated region
      $region13: #{tpu_custom_call.1} parent=11 // pred_check
        %p118 = pneg %p56
      $region14: #{tpu_custom_call.1} parent=11 // pred_check_branch
        %120 = sbr.rel (%p118) target = $region16
      $region15: #{tpu_custom_call.1} parent=11 // pred_region
        _
      $region16: #{tpu_custom_call.1} parent=11 // pred_fallthru
        _
      // Predicated region
      $region17: #{tpu_custom_call.1} parent=11 // pred_check
        %p121 = pneg %p77
      $region18: #{tpu_custom_call.1} parent=11 // pred_check_branch
        %123 = sbr.rel (%p121) target = $region20
      $region19: #{tpu_custom_call.1} parent=11 // pred_region
        _
      $region20: #{tpu_custom_call.1} parent=11 // pred_fallthru
        _
    $region12: #{tpu_custom_call.1} parent=5 // pred_fallthru
      _
    %p124 = scmp.lt.s32.totalorder %s9, 2
    // Predicated region
    $region21: #{tpu_custom_call.1} parent=5 // pred_check
      %p125 = pneg %p124
    $region22: #{tpu_custom_call.1} parent=5 // pred_check_branch
      %127 = sbr.rel (%p125) target = $region24
    $region23: #{tpu_custom_call.1} parent=5 // pred_region
      // Predicated region
      $region25: #{tpu_custom_call.1} parent=23 // pred_check
        %p128 = pneg %p29
      $region26: #{tpu_custom_call.1} parent=23 // pred_check_branch
        %130 = sbr.rel (%p128) target = $region28
      $region27: #{tpu_custom_call.1} parent=23 // pred_region
        %s131 = smul.u32 8, %s9
        %p132 = scmp.lt.s32.totalorder %s131, 15
        %s133 = scalar_select %p132, %s131, 15
        %s134 = smul.addr %s133, 8
        %s135 = scalar_lea.vmem %s0, %s134
        %s136 = smul.u32 8, %s9
      $region28: #{tpu_custom_call.1} parent=23 // pred_fallthru
        _
    $region24: #{tpu_custom_call.1} parent=5 // pred_fallthru
      _
    %p137 = scmp.le.s32.totalorder 1, %s9
    %p138 = scmp.lt.s32.totalorder %s9, 3
    %p139 = pnand %p137, %p138
    %p140 = pneg %p139
    // Predicated region
    $region29: #{tpu_custom_call.1} parent=5 // pred_check
      _
    $region30: #{tpu_custom_call.1} parent=5 // pred_check_branch
      %142 = sbr.rel (%p139) target = $region32
    $region31: #{tpu_custom_call.1} parent=5 // pred_region
      %s143 = ssub.s32 %s9, 1
      %s144 = smul.u32 8, %s14
      %p145 = scmp.lt.s32.totalorder %s144, 15
      %s146 = scalar_select %p145, %s144, 15
      %s147 = smul.addr %s146, 8
      %s148 = scalar_lea.vmem %s0, %s147
      %p149 = pneg %p35
      %p150 = pneg %p32
      %p151 = pneg %p56
      %p152 = pneg %p53
      %p153 = pneg %p77
      %p154 = pneg %p74
      %p155 = pneg %p103
      %p156 = pneg %p100
      %s157 = smul.u32 8, %s14
      %p158 = scmp.lt.s32.totalorder %s157, 15
      %s159 = scalar_select %p158, %s157, 15
      %s160 = smul.addr %s159, 8
      %s161 = scalar_lea.vmem %s3, %s160
      %s162 = smul.u32 8, %s14
      %p163 = scmp.lt.s32.totalorder %s162, 15
      %s164 = scalar_select %p163, %s162, 15
      %s165 = smul.addr %s164, 8
      %s166 = scalar_lea.vmem %s0, %s165
      %s167 = smul.u32 8, %s14
      %s168 = smul.u32 8, %s14
      %p169 = scmp.lt.s32.totalorder %s168, 15
      %s170 = scalar_select %p169, %s168, 15
      %s171 = smul.addr %s170, 8
      %s172 = scalar_lea.vmem %s3, %s171
      %s173 = smul.u32 8, %s14
      %v174 = vld [vmem:[%s166] sm:$0xff]
      %v175 = vld [vmem:[%s166 + $0x8] sm:$0xff]
      %v176 = vld [vmem:[%s166 + $0x10] sm:$0xff]
      %v177 = vld [vmem:[%s166 + $0x18] sm:$0xff]
      %v178 = vld [vmem:[%s166 + $0x20] sm:$0xff]
      %v179 = vld [vmem:[%s166 + $0x28] sm:$0xff]
      %v180 = vld [vmem:[%s166 + $0x30] sm:$0xff]
      %v181 = vld [vmem:[%s166 + $0x38] sm:$0xff]
      %vm182 = vcmask 130048
      %v183 = vsel %vm182, %v174, 0.0
      %184 = vadd.xlane.f32.xlu0 %v183
      %v185 = vpop.xlane.xlu0 %184
      %v186 = vsel %vm182, %v175, 0.0
      %187 = vadd.xlane.f32.xlu0 %v186
      %v188 = vpop.xlane.xlu0 %187
      %v189 = vsel %vm182, %v176, 0.0
      %190 = vadd.xlane.f32.xlu0 %v189
      %v191 = vpop.xlane.xlu0 %190
      %v192 = vsel %vm182, %v177, 0.0
      %193 = vadd.xlane.f32.xlu0 %v192
      %v194 = vpop.xlane.xlu0 %193
      %v195 = vsel %vm182, %v178, 0.0
      %196 = vadd.xlane.f32.xlu0 %v195
      %v197 = vpop.xlane.xlu0 %196
      %v198 = vsel %vm182, %v179, 0.0
      %199 = vadd.xlane.f32.xlu0 %v198
      %v200 = vpop.xlane.xlu0 %199
      %v201 = vsel %vm182, %v180, 0.0
      %202 = vadd.xlane.f32.xlu0 %v201
      %v203 = vpop.xlane.xlu0 %202
      %v204 = vsel %vm182, %v181, 0.0
      %205 = vadd.xlane.f32.xlu0 %v204
      %v206 = vpop.xlane.xlu0 %205
      %v207 = vrcp.pop 16.0
      %v208 = vmul.f32 16.0, %v207
      %v209 = vsub.f32 1.0, %v208
      %v210 = vmul.f32 %v207, %v209
      %v211 = vadd.f32 %v207, %v210
      %vm212 = vweird.f32 %v207
      %v213 = vsel %vm212, %v207, %v211
      %v214 = vmul.f32 %v185, %v213
      %v215 = vmul.f32 %v188, %v213
      %v216 = vmul.f32 %v191, %v213
      %v217 = vmul.f32 %v194, %v213
      %v218 = vmul.f32 %v197, %v213
      %v219 = vmul.f32 %v200, %v213
      %v220 = vmul.f32 %v203, %v213
      %v221 = vmul.f32 %v206, %v213
      %v222 = vsub.f32 %v174, %v214
      %v223 = vsub.f32 %v175, %v215
      %v224 = vsub.f32 %v176, %v216
      %v225 = vsub.f32 %v177, %v217
      %v226 = vsub.f32 %v178, %v218
      %v227 = vsub.f32 %v179, %v219
      %v228 = vsub.f32 %v180, %v220
      %v229 = vsub.f32 %v181, %v221
      %v230 = vmul.f32 %v222, %v222
      %v231 = vmul.f32 %v223, %v223
      %v232 = vmul.f32 %v224, %v224
      %v233 = vmul.f32 %v225, %v225
      %v234 = vmul.f32 %v226, %v226
      %v235 = vmul.f32 %v227, %v227
      %v236 = vmul.f32 %v228, %v228
      %v237 = vmul.f32 %v229, %v229
      %v238 = vsel %vm182, %v230, 0.0
      %239 = vadd.xlane.f32.xlu0 %v238
      %v240 = vpop.xlane.xlu0 %239
      %v241 = vsel %vm182, %v231, 0.0
      %242 = vadd.xlane.f32.xlu0 %v241
      %v243 = vpop.xlane.xlu0 %242
      %v244 = vsel %vm182, %v232, 0.0
      %245 = vadd.xlane.f32.xlu0 %v244
      %v246 = vpop.xlane.xlu0 %245
      %v247 = vsel %vm182, %v233, 0.0
      %248 = vadd.xlane.f32.xlu0 %v247
      %v249 = vpop.xlane.xlu0 %248
      %v250 = vsel %vm182, %v234, 0.0
      %251 = vadd.xlane.f32.xlu0 %v250
      %v252 = vpop.xlane.xlu0 %251
      %v253 = vsel %vm182, %v235, 0.0
      %254 = vadd.xlane.f32.xlu0 %v253
      %v255 = vpop.xlane.xlu0 %254
      %v256 = vsel %vm182, %v236, 0.0
      %257 = vadd.xlane.f32.xlu0 %v256
      %v258 = vpop.xlane.xlu0 %257
      %v259 = vsel %vm182, %v237, 0.0
      %260 = vadd.xlane.f32.xlu0 %v259
      %v261 = vpop.xlane.xlu0 %260
      %v262 = vmul.f32 %v240, %v213
      %v263 = vmul.f32 %v243, %v213
      %v264 = vmul.f32 %v246, %v213
      %v265 = vmul.f32 %v249, %v213
      %v266 = vmul.f32 %v252, %v213
      %v267 = vmul.f32 %v255, %v213
      %v268 = vmul.f32 %v258, %v213
      %v269 = vmul.f32 %v261, %v213
      %v270 = vadd.f32 %v262, 1e-05
      %v271 = vadd.f32 %v263, 1e-05
      %v272 = vadd.f32 %v264, 1e-05
      %v273 = vadd.f32 %v265, 1e-05
      %v274 = vadd.f32 %v266, 1e-05
      %v275 = vadd.f32 %v267, 1e-05
      %v276 = vadd.f32 %v268, 1e-05
      %v277 = vadd.f32 %v269, 1e-05
      %v278 = vrsqrt.pop %v270
      %v279 = vmul.f32 %v278, %v270
      %v280 = vmul.f32 %v279, %v278
      %v281 = vmul.f32 0.5, %v280
      %v282 = vsub.f32 1.5, %v281
      %v283 = vmul.f32 %v278, %v282
      %vm284 = vweird.f32 %v270
      %vm285 = vweird.f32 %v278
      %vm286 = vmor %vm284, %vm285
      %v287 = vsel %vm286, %v278, %v283
      %v288 = vrsqrt.pop %v271
      %v289 = vmul.f32 %v288, %v271
      %v290 = vmul.f32 %v289, %v288
      %v291 = vmul.f32 0.5, %v290
      %v292 = vsub.f32 1.5, %v291
      %v293 = vmul.f32 %v288, %v292
      %vm294 = vweird.f32 %v271
      %vm295 = vweird.f32 %v288
      %vm296 = vmor %vm294, %vm295
      %v297 = vsel %vm296, %v288, %v293
      %v298 = vrsqrt.pop %v272
      %v299 = vmul.f32 %v298, %v272
      %v300 = vmul.f32 %v299, %v298
      %v301 = vmul.f32 0.5, %v300
      %v302 = vsub.f32 1.5, %v301
      %v303 = vmul.f32 %v298, %v302
      %vm304 = vweird.f32 %v272
      %vm305 = vweird.f32 %v298
      %vm306 = vmor %vm304, %vm305
      %v307 = vsel %vm306, %v298, %v303
      %v308 = vrsqrt.pop %v273
      %v309 = vmul.f32 %v308, %v273
      %v310 = vmul.f32 %v309, %v308
      %v311 = vmul.f32 0.5, %v310
      %v312 = vsub.f32 1.5, %v311
      %v313 = vmul.f32 %v308, %v312
      %vm314 = vweird.f32 %v273
      %vm315 = vweird.f32 %v308
      %vm316 = vmor %vm314, %vm315
      %v317 = vsel %vm316, %v308, %v313
      %v318 = vrsqrt.pop %v274
      %v319 = vmul.f32 %v318, %v274
      %v320 = vmul.f32 %v319, %v318
      %v321 = vmul.f32 0.5, %v320
      %v322 = vsub.f32 1.5, %v321
      %v323 = vmul.f32 %v318, %v322
      %vm324 = vweird.f32 %v274
      %vm325 = vweird.f32 %v318
      %vm326 = vmor %vm324, %vm325
      %v327 = vsel %vm326, %v318, %v323
      %v328 = vrsqrt.pop %v275
      %v329 = vmul.f32 %v328, %v275
      %v330 = vmul.f32 %v329, %v328
      %v331 = vmul.f32 0.5, %v330
      %v332 = vsub.f32 1.5, %v331
      %v333 = vmul.f32 %v328, %v332
      %vm334 = vweird.f32 %v275
      %vm335 = vweird.f32 %v328
      %vm336 = vmor %vm334, %vm335
      %v337 = vsel %vm336, %v328, %v333
      %v338 = vrsqrt.pop %v276
      %v339 = vmul.f32 %v338, %v276
      %v340 = vmul.f32 %v339, %v338
      %v341 = vmul.f32 0.5, %v340
      %v342 = vsub.f32 1.5, %v341
      %v343 = vmul.f32 %v338, %v342
      %vm344 = vweird.f32 %v276
      %vm345 = vweird.f32 %v338
      %vm346 = vmor %vm344, %vm345
      %v347 = vsel %vm346, %v338, %v343
      %v348 = vrsqrt.pop %v277
      %v349 = vmul.f32 %v348, %v277
      %v350 = vmul.f32 %v349, %v348
      %v351 = vmul.f32 0.5, %v350
      %v352 = vsub.f32 1.5, %v351
      %v353 = vmul.f32 %v348, %v352
      %vm354 = vweird.f32 %v277
      %vm355 = vweird.f32 %v348
      %vm356 = vmor %vm354, %vm355
      %v357 = vsel %vm356, %v348, %v353
      %v358 = vmul.f32 %v222, %v287
      %v359 = vmul.f32 %v223, %v297
      %v360 = vmul.f32 %v224, %v307
      %v361 = vmul.f32 %v225, %v317
      %v362 = vmul.f32 %v226, %v327
      %v363 = vmul.f32 %v227, %v337
      %v364 = vmul.f32 %v228, %v347
      %v365 = vmul.f32 %v229, %v357
      %v366 = vld [vmem:[%s1] sm:$0x1]
      %v368 = vperm.slane %v366, 0
      %v370 = vmul.f32 %v358, %v368
      %v371 = vmul.f32 %v359, %v368
      %v372 = vmul.f32 %v360, %v368
      %v373 = vmul.f32 %v361, %v368
      %v374 = vmul.f32 %v362, %v368
      %v375 = vmul.f32 %v363, %v368
      %v376 = vmul.f32 %v364, %v368
      %v377 = vmul.f32 %v365, %v368
      %v378 = vld [vmem:[%s2] sm:$0x1]
      %v380 = vperm.slane %v378, 0
      %v382 = vadd.f32 %v370, %v380
      %v383 = vadd.f32 %v371, %v380
      %v384 = vadd.f32 %v372, %v380
      %v385 = vadd.f32 %v373, %v380
      %v386 = vadd.f32 %v374, %v380
      %v387 = vadd.f32 %v375, %v380
      %v388 = vadd.f32 %v376, %v380
      %v389 = vadd.f32 %v377, %v380
      %390 = vst.msk [vmem:[%s172] sm:$0xff] %vm182, %v382
      %391 = vst.msk [vmem:[%s172 + $0x8] sm:$0xff] %vm182, %v383
      %392 = vst.msk [vmem:[%s172 + $0x10] sm:$0xff] %vm182, %v384
      %393 = vst.msk [vmem:[%s172 + $0x18] sm:$0xff] %vm182, %v385
      %394 = vst.msk [vmem:[%s172 + $0x20] sm:$0xff] %vm182, %v386
      %395 = vst.msk [vmem:[%s172 + $0x28] sm:$0xff] %vm182, %v387
      %396 = vst.msk [vmem:[%s172 + $0x30] sm:$0xff] %vm182, %v388
      %397 = vst.msk [vmem:[%s172 + $0x38] sm:$0xff] %vm182, %v389
      %s398 = smul.u32 8, %s14
      %p399 = scmp.lt.s32.totalorder %s398, 15
      %s400 = scalar_select %p399, %s398, 15
      %s401 = smul.addr %s400, 8
      %s402 = scalar_lea.vmem %s3, %s401
      // Predicated region
      $region33: #{tpu_custom_call.1} parent=31 // pred_check
        %p403 = pneg %p100
      $region34: #{tpu_custom_call.1} parent=31 // pred_check_branch
        %405 = sbr.rel (%p403) target = $region36
      $region35: #{tpu_custom_call.1} parent=31 // pred_region
        %s406 = smul.u32 8, %s14
      $region36: #{tpu_custom_call.1} parent=31 // pred_fallthru
        _
    $region32: #{tpu_custom_call.1} parent=5 // pred_fallthru
      _
    %p407 = scmp.le.s32.totalorder 2, %s9
    // Predicated region
    $region37: #{tpu_custom_call.1} parent=5 // pred_check
      %p408 = pneg %p407
    $region38: #{tpu_custom_call.1} parent=5 // pred_check_branch
      %410 = sbr.rel (%p408) target = $region40
    $region39: #{tpu_custom_call.1} parent=5 // pred_region
      %s411 = ssub.s32 %s9, 2
      // Predicated region
      $region41: #{tpu_custom_call.1} parent=39 // pred_check
        %p412 = pneg %p106
      $region42: #{tpu_custom_call.1} parent=39 // pred_check_branch
        %414 = sbr.rel (%p412) target = $region44
      $region43: #{tpu_custom_call.1} parent=39 // pred_region
        %s415 = smul.u32 8, %s15
        %p416 = scmp.lt.s32.totalorder %s415, 15
        %s417 = scalar_select %p416, %s415, 15
        %s418 = smul.addr %s417, 8
        %s419 = scalar_lea.vmem %s3, %s418
      $region44: #{tpu_custom_call.1} parent=39 // pred_fallthru
        _
    $region40: #{tpu_custom_call.1} parent=5 // pred_fallthru
      _
  $region6: #{tpu_custom_call.1} parent=0 // loop_footer
    %s13 = sadd.s32 1, %s9
  $region7: #{tpu_custom_call.1} parent=0 // loop_footer_branch
    %8 = sbr.rel target = $region3
  $region8: #{tpu_custom_call.1} parent=0 // loop_exit
    _

</llo_original>
